<compile_context>
chip_gen: v7x
topology: tpu7x:2x2x1
jax: 0.10.0
libtpu: 0.0.40
codegen_flags: <defaults>
</compile_context>

<pallas_src>
import jax
import jax.numpy as jnp
from jax.experimental import pallas as pl
from jax.experimental.pallas import tpu as pltpu

LANE = 128
# Max tile rows (of 128 lanes each).  Per-step VMEM for P=2:
#   2 bufs * (P + 1) * R_MAX * 128 * 4 B  =  24 B * R_MAX * 128  ~= 12 MiB,
# which fits the default scoped VMEM on v5e (16 MiB) and v6e/v7x (32 MiB).
R_MAX = 4096


def logreg_kernel(x_ref, w_ref, b_ref, o_ref):
    # x_ref: [P, R, 128] f32 in VMEM  (features major; batch dense on sublanes/lanes)
    # w_ref: [P]  f32 in SMEM         (Linear weight, read as scalars)
    # b_ref: [1]  f32 in SMEM         (Linear bias, read as a scalar)
    # o_ref: [R, 128] f32 in VMEM     (sublane- and lane-dense output slab)
    p_dim = x_ref.shape[0]
    # VPU elementwise FMA chain over the tiny, static feature dimension.
    logits = x_ref[0] * w_ref[0] + b_ref[0]
    for p in range(1, p_dim):
        logits = logits + x_ref[p] * w_ref[p]
    # sigmoid on the EUP path; math stays in f32.
    o_ref[...] = jax.nn.sigmoid(logits).astype(o_ref.dtype)


def logistic_regression(x, weight, bias):
    """x: [N, P] f32, weight: [1, P] (or [P]) f32, bias: [1] f32 -> [N, 1]."""
    N, P = x.shape

    # Pad the batch only to the lane boundary (never to the tile size).
    n_pad = pl.cdiv(N, LANE) * LANE
    n_rows = n_pad // LANE

    # Tile-row selection:
    #   small N  -> one tile covering everything (single grid step).
    #   large N  -> >=2 tiles (both v7x TensorCores busy), capped at R_MAX for
    #               VMEM; the last tile may be ragged (Pallas masks the tail).
    if n_rows <= R_MAX:
        r_tile = n_rows
    else:
        half = ((pl.cdiv(n_rows, 2) + 7) // 8) * 8   # multiple of 8 sublanes
        r_tile = min(R_MAX, half)
    grid = (pl.cdiv(n_rows, r_tile),)

    # Single fused transpose/cast/pad pass, then a free row-major reshape to
    # the sublane-dense [P, n_rows, 128] layout.
    xT = jnp.pad(x.T.astype(jnp.float32), ((0, 0), (0, n_pad - N)))
    xT = xT.reshape(P, n_rows, LANE)
    w = weight.reshape(-1).astype(jnp.float32)   # [P] scalars -> SMEM
    b = bias.reshape(-1).astype(jnp.float32)     # [1] scalar  -> SMEM

    out = pl.pallas_call(
        logreg_kernel,
        out_shape=jax.ShapeDtypeStruct((n_rows, LANE), jnp.float32),
        grid=grid,
        in_specs=[
            pl.BlockSpec((P, r_tile, LANE), lambda i: (0, i, 0)),
            pl.BlockSpec(memory_space=pltpu.MemorySpace.SMEM),
            pl.BlockSpec(memory_space=pltpu.MemorySpace.SMEM),
        ],
        out_specs=pl.BlockSpec((r_tile, LANE), lambda i: (i, 0)),
        compiler_params=pltpu.CompilerParams(
            dimension_semantics=("parallel",)),
    )(xT, w, b)

    # Strip lane padding and restore the PyTorch-style [N, 1] output.
    return out.reshape(n_pad)[:N].reshape(N, 1).astype(x.dtype)


if __name__ == "__main__":
    key = jax.random.PRNGKey(0)
    k_x, k_w, k_b = jax.random.split(key, 3)

    # Shapes implied by the reference script: p = 2 features, N = 100 samples.
    N, P = 100, 2

    # Synthetic input (stands in for the multivariate-normal samples).
    x = jax.random.normal(k_x, (N, P), dtype=jnp.float32)

    # Deterministic Linear(p, 1) parameters, init like nn.Linear:
    # U(-1/sqrt(p), 1/sqrt(p)) for both weight and bias.
    bound = 1.0 / jnp.sqrt(jnp.float32(P))
    weight = jax.random.uniform(k_w, (1, P), jnp.float32, -bound, bound)
    bias = jax.random.uniform(k_b, (1,), jnp.float32, -bound, bound)

    out = logistic_regression(x, weight, bias)
    out = jax.block_until_ready(out)

    # Reference check in plain JAX.
    ref = jax.nn.sigmoid(x @ weight.T + bias[None, :])
    assert out.shape == (N, 1)
    assert jnp.allclose(out, ref, atol=1e-5, rtol=1e-5)

    # Secondary check: a batch that is not a multiple of 128 (exercises the
    # lane-padding / slicing path).
    x2 = jax.random.normal(jax.random.PRNGKey(1), (300, P), dtype=jnp.float32)
    out2 = jax.block_until_ready(logistic_regression(x2, weight, bias))
    ref2 = jax.nn.sigmoid(x2 @ weight.T + bias[None, :])
    assert jnp.allclose(out2, ref2, atol=1e-5, rtol=1e-5)

    print("KERNEL_OK")
</pallas_src>

<mosaic_0001>
module attributes {stable_mosaic.version = 11 : i64} {
  func.func @logreg_kernel(%arg0: i32, %arg1: memref<2x1x128xf32, #tpu.memory_space<vmem>>, %arg2: memref<2xf32, #tpu.memory_space<smem>>, %arg3: memref<1xf32, #tpu.memory_space<smem>>, %arg4: memref<1x128xf32, #tpu.memory_space<vmem>>) attributes {dimension_semantics = [#tpu.dimension_semantics<parallel>], iteration_bounds = array<i64: 1>, scalar_prefetch = 0 : i64, scratch_operands = 0 : i64, tpu.core_type = #tpu.core_type<tc>, window_params = [{transform_indices = @transform_0, window_bounds = array<i64: 2, 1, 128>}, {transform_indices = @transform_1, window_bounds = array<i64: 2>}, {transform_indices = @transform_2, window_bounds = array<i64: 1>}, {transform_indices = @transform_3, window_bounds = array<i64: 1, 128>}]} {
    %c0 = arith.constant 0 : index
    %c0_0 = arith.constant 0 : index
    %c0_1 = arith.constant 0 : index
    %0 = vector.load %arg1[%c0, %c0_0, %c0_1] : memref<2x1x128xf32, #tpu.memory_space<vmem>>, vector<1x1x128xf32>
    %1 = vector.shape_cast %0 : vector<1x1x128xf32> to vector<1x128xf32>
    %c0_2 = arith.constant 0 : index
    %2 = memref.load %arg2[%c0_2] : memref<2xf32, #tpu.memory_space<smem>>
    %3 = vector.broadcast %2 : f32 to vector<1x128xf32>
    %4 = arith.mulf %1, %3 : vector<1x128xf32>
    %c0_3 = arith.constant 0 : index
    %5 = memref.load %arg3[%c0_3] : memref<1xf32, #tpu.memory_space<smem>>
    %6 = vector.broadcast %5 : f32 to vector<1x128xf32>
    %7 = arith.addf %4, %6 : vector<1x128xf32>
    %c1 = arith.constant 1 : index
    %c0_4 = arith.constant 0 : index
    %c0_5 = arith.constant 0 : index
    %8 = vector.load %arg1[%c1, %c0_4, %c0_5] : memref<2x1x128xf32, #tpu.memory_space<vmem>>, vector<1x1x128xf32>
    %9 = vector.shape_cast %8 : vector<1x1x128xf32> to vector<1x128xf32>
    %c1_6 = arith.constant 1 : index
    %10 = memref.load %arg2[%c1_6] : memref<2xf32, #tpu.memory_space<smem>>
    %11 = vector.broadcast %10 : f32 to vector<1x128xf32>
    %12 = arith.mulf %9, %11 : vector<1x128xf32>
    %13 = arith.addf %7, %12 : vector<1x128xf32>
    %14 = arith.negf %13 : vector<1x128xf32>
    %15 = math.exp %14 : vector<1x128xf32>
    %cst = arith.constant 1.000000e+00 : f32
    %16 = vector.broadcast %cst : f32 to vector<1x128xf32>
    %17 = arith.addf %16, %15 : vector<1x128xf32>
    %18 = arith.divf %16, %17 : vector<1x128xf32>
    %c0_7 = arith.constant 0 : index
    %c0_8 = arith.constant 0 : index
    %19 = vector.load %arg4[%c0_7, %c0_8] : memref<1x128xf32, #tpu.memory_space<vmem>>, vector<1x128xf32>
    tpu.vector_store %arg4[%c0_7, %c0_8], %18 {strides = array<i32>} : memref<1x128xf32, #tpu.memory_space<vmem>>, vector<1x128xf32>,
    return
  }
  func.func @transform_0(%arg0: i32) -> (i32, i32, i32) {
    %c0_i32 = arith.constant 0 : i32
    %c0_i32_0 = arith.constant 0 : i32
    %c0_i32_1 = arith.constant 0 : i32
    return %c0_i32, %arg0, %c0_i32_0 : i32, i32, i32
  }
  func.func @transform_1(%arg0: i32) -> i32 {
    %c0_i32 = arith.constant 0 : i32
    %c0_i32_0 = arith.constant 0 : i32
    return %c0_i32 : i32
  }
  func.func @transform_2(%arg0: i32) -> i32 {
    %c0_i32 = arith.constant 0 : i32
    %c0_i32_0 = arith.constant 0 : i32
    return %c0_i32 : i32
  }
  func.func @transform_3(%arg0: i32) -> (i32, i32) {
    %c0_i32 = arith.constant 0 : i32
    %c0_i32_0 = arith.constant 0 : i32
    return %arg0, %c0_i32 : i32, i32
  }
}

</mosaic_0001>

<llo_original>
// kernel: tpu_custom_call.1
$region0: #{tpu_custom_call.1}
  #allocation0 [shape = 'u32[]', space=smem, size = 0x4, offset = 0x4, fixed_abs, tag = 'smem constant byte address 0x4 - core index']
  #allocation1 [shape = 'u32[144,128]{1,0:T(1,128)}', space=vmem, size = 0x12000, scoped, tag = 'internal scratch']
  #allocation2 [shape = 'f32[1]{0:T(128)S(6)}', space=smem, size = 0x200, scoped, tag = 'scoped memory for tpu_custom_call.1']
  %s0 = inlined_call_operand.vmem [shape: f32[2,1,128], index: 0, kind: input, shape index: {}]
  %s1 = inlined_call_operand.vmem [shape: f32[2], index: 1, kind: input, shape index: {}]
  %s2 = inlined_call_operand.<no memory space> [shape: f32[1], index: 2, kind: input, shape index: {}]
  %s3 = inlined_call_operand.hbm [shape: f32[1,128], index: 3, kind: output, shape index: {}]
  %s4 = sld [smem:[#allocation0]]
  $region26: #{tpu_custom_call.1} parent=0
    _
  %s6 = ssub.s32 1, %s4
  %s7 = scalar_select 0, %s6, %s4
  %8 = sst [smem:[#allocation2]] %s2
  $region1: #{tpu_custom_call.1} parent=0
    #allocation3 [shape = 'u8[512]{0}', space=smem, size = 0x200, scoped, tag = 'input window, operand 1, single buffered']
    #allocation4 [shape = 's32[1]{0}', space=sflag, size = 0x4, scoped, tag = 'scoped memory for tpu_custom_call.1']
    #allocation5 [shape = 's32[1]{0}', space=sflag, size = 0x4, scoped, tag = 'scoped memory for tpu_custom_call.1']
    #allocation6 [shape = 'u8[512]{0}', space=vmem, size = 0x400, scoped, tag = 'output window, operand 0, single buffered']
    %9 = vsyncpa [#allocation5], 0
    %10 = vsyncpa [#allocation4], 0
    // Predicated region
    $region2: #{tpu_custom_call.1} parent=1 // pred_check
      _
    $region3: #{tpu_custom_call.1} parent=1 // pred_check_branch
      %12 = sbr.rel (0) target = $region5
    $region4: #{tpu_custom_call.1} parent=1 // pred_region
      _
    $region5: #{tpu_custom_call.1} parent=1 // pred_fallthru
      _
    // Predicated region
    $region6: #{tpu_custom_call.1} parent=1 // pred_check
      _
    $region7: #{tpu_custom_call.1} parent=1 // pred_check_branch
      %14 = sbr.rel (0) target = $region9
    $region8: #{tpu_custom_call.1} parent=1 // pred_region
      %s16 = ssub.s32 16, 16
      %17 = vsyncadd [#allocation5], %s16
      %s19 = sshll.u32 %s1, 4
      %s20 = int_to_ptr.vmem [resolvable:$true] %s19
      %22 = dma.vmem_to_smem %s20, 16, [#allocation3], [#allocation5]
    $region9: #{tpu_custom_call.1} parent=1 // pred_fallthru
      _
    // Predicated region
    $region10: #{tpu_custom_call.1} parent=1 // pred_check
      _
    $region11: #{tpu_custom_call.1} parent=1 // pred_check_branch
      %24 = sbr.rel (0) target = $region13
    $region12: #{tpu_custom_call.1} parent=1 // pred_region
      _
    $region13: #{tpu_custom_call.1} parent=1 // pred_fallthru
      _
    // Predicated region
    $region14: #{tpu_custom_call.1} parent=1 // pred_check
      _
    $region15: #{tpu_custom_call.1} parent=1 // pred_check_branch
      %26 = sbr.rel (0) target = $region17
    $region16: #{tpu_custom_call.1} parent=1 // pred_region
      %27 = dma.done [#allocation5], 16
    $region17: #{tpu_custom_call.1} parent=1 // pred_fallthru
      _
    %28 = sfence
    %v29 = vld [vmem:[%s0] sm:$0x1]
    %s30 = sld [smem:[#allocation3]]
    %v31 = vstv %s30
    %v32 = vmul.f32 %v29, %v31
    %s33 = sld [smem:[#allocation2]]
    %v34 = vstv %s33
    %v35 = vadd.f32 %v32, %v34
    %s36 = scalar_lea.vmem %s0, 1
    %v37 = vld [vmem:[%s36] sm:$0x1]
    %s38 = sld [smem:[#allocation3 + $0x1]]
    %v39 = vstv %s38
    %v40 = vmul.f32 %v37, %v39
    %v41 = vadd.f32 %v35, %v40
    %v42 = vxor.u32 %v41, 2147483648
    %v43 = vmul.f32 %v42, 1.442695
    %v44 = vpow.pop %v43
    %v45 = vadd.f32 %v44, 1.0
    %v46 = vrcp.pop %v45
    %v47 = vmul.f32 1.0, %v46
    %48 = vst [vmem:[#allocation6] sm:$0x1] %v47
    // Predicated region
    $region18: #{tpu_custom_call.1} parent=1 // pred_check
      _
    $region19: #{tpu_custom_call.1} parent=1 // pred_check_branch
      %50 = sbr.rel (0) target = $region21
    $region20: #{tpu_custom_call.1} parent=1 // pred_region
      %s52 = ssub.s32 16, 16
      %53 = vsyncadd [#allocation4], %s52
      %s55 = sshll.u32 [#allocation6], 4
      %s56 = int_to_ptr.vmem [resolvable:$true] %s55
      %58 = dma.vmem_to_hbm [thread:$0]  %s56, 16, %s3, [#allocation4]
    $region21: #{tpu_custom_call.1} parent=1 // pred_fallthru
      _
    // Predicated region
    $region22: #{tpu_custom_call.1} parent=1 // pred_check
      _
    $region23: #{tpu_custom_call.1} parent=1 // pred_check_branch
      %60 = sbr.rel (0) target = $region25
    $region24: #{tpu_custom_call.1} parent=1 // pred_region
      %61 = dma.done [#allocation4], 16
    $region25: #{tpu_custom_call.1} parent=1 // pred_fallthru
      _
    %62 = vsyncpa [#allocation4], 1
    %63 = vsyncpa [#allocation5], 1

</llo_original>
